<compile_context>
chip_gen: v7x
topology: tpu7x:2x2x1
jax: 0.10.0
libtpu: 0.0.40
codegen_flags: <defaults>
</compile_context>

<pallas_src>
import functools

import jax
import jax.numpy as jnp
from jax.experimental import pallas as pl
from jax.experimental.pallas import tpu as pltpu


def _round_up(x, m):
    return ((x + m - 1) // m) * m


def _choose_batch_tile(B, tb):
    """Batch tile: >=16 rows (bf16 packs 16 sublanes/vreg); multiple of 256 for
    large batches (v6e/v7x 256-row MXU); capped so the grid has >=2 'parallel'
    steps when the batch is large enough (v7x has 2 TensorCores)."""
    cap = _round_up(B, 16)
    t = min(max(tb, 16), cap)
    if t >= 256:
        t = (t // 256) * 256
        if B >= 512 and _round_up(B, t) // t < 2:
            t = max(256, ((B // 2) // 256) * 256)
    else:
        t = _round_up(t, 16)
    return t


def _mlp_kernel(x_ref,
                w1_ref, b1_ref,
                w2_ref, b2_ref,
                w3_ref, b3_ref,
                w4_ref, b4_ref,
                o_ref):
    # x: (TB, IN) f32 (cast to bf16 here - VPU has slack); weights bf16;
    # biases f32; output (TB, OUT_P) lane-dense.
    x = x_ref[...].astype(jnp.bfloat16)

    # fc1 -> ReLU (dropout = identity in eval mode)
    h = jnp.dot(x, w1_ref[...], preferred_element_type=jnp.float32) + b1_ref[...]
    h = jnp.maximum(h, 0.0)

    # fc2 -> ReLU
    h = jnp.dot(h.astype(jnp.bfloat16), w2_ref[...],
                preferred_element_type=jnp.float32) + b2_ref[...]
    h = jnp.maximum(h, 0.0)

    # fc3 -> ReLU
    h = jnp.dot(h.astype(jnp.bfloat16), w3_ref[...],
                preferred_element_type=jnp.float32) + b3_ref[...]
    h = jnp.maximum(h, 0.0)

    # fc4 (no activation) -- lane-dense (TB, OUT_P) store
    out = jnp.dot(h.astype(jnp.bfloat16), w4_ref[...],
                  preferred_element_type=jnp.float32) + b4_ref[...]

    o_ref[...] = out.astype(o_ref.dtype)


def prepare_params(params):
    """One-time weight packing: bf16 weights, f32 biases, fc4/b4 lane-padded
    to 128 output columns.  Do this once, outside the per-call forward."""
    hidden = params["w1"].shape[1]
    out_size = params["w4"].shape[1]
    out_p = _round_up(max(out_size, 128), 128)   # 10 -> 128
    packed = {
        "w1": params["w1"].astype(jnp.bfloat16),
        "b1": params["b1"].astype(jnp.float32),
        "w2": params["w2"].astype(jnp.bfloat16),
        "b2": params["b2"].astype(jnp.float32),
        "w3": params["w3"].astype(jnp.bfloat16),
        "b3": params["b3"].astype(jnp.float32),
        "w4": jnp.zeros((hidden, out_p), jnp.bfloat16).at[:, :out_size].set(
            params["w4"].astype(jnp.bfloat16)),
        "b4": jnp.zeros((1, out_p), jnp.float32).at[:, :out_size].set(
            params["b4"].astype(jnp.float32)),
    }
    return packed, out_size


@functools.partial(jax.jit,
                   static_argnames=("out_size", "tb", "training", "out_dtype"))
def network_forward(x, packed, *, out_size, tb=512, training=False,
                    out_dtype=jnp.float32):
    """Fused 4-layer MLP forward (eval mode).

    x:      (B, input_size) float32
    packed: output of prepare_params()
    returns (B, out_size) out_dtype
    """
    if training:
        # TODO(synk): training-mode dropout (p=0.5) would need pltpu.prng_seed
        # + pltpu.prng_random_bits; only the eval-mode forward is implemented.
        raise NotImplementedError("training-mode dropout not implemented")

    B, in_size = x.shape
    hidden = packed["w1"].shape[1]
    out_p = packed["w4"].shape[1]

    TB = _choose_batch_tile(B, tb)
    Bp = _round_up(B, TB)
    grid = (Bp // TB,)

    # Pad the batch only when needed (f32, no dtype/lane repack of x).
    x_p = x if Bp == B else jnp.pad(x, ((0, Bp - B), (0, 0)))

    in_specs = [
        pl.BlockSpec((TB, in_size), lambda i: (i, 0)),       # x tile (streams)
        pl.BlockSpec((in_size, hidden), lambda i: (0, 0)),   # w1 (resident)
        pl.BlockSpec((1, hidden), lambda i: (0, 0)),         # b1
        pl.BlockSpec((hidden, hidden), lambda i: (0, 0)),    # w2
        pl.BlockSpec((1, hidden), lambda i: (0, 0)),         # b2
        pl.BlockSpec((hidden, hidden), lambda i: (0, 0)),    # w3
        pl.BlockSpec((1, hidden), lambda i: (0, 0)),         # b3
        pl.BlockSpec((hidden, out_p), lambda i: (0, 0)),     # w4 (lane-padded)
        pl.BlockSpec((1, out_p), lambda i: (0, 0)),          # b4
    ]
    out_specs = pl.BlockSpec((TB, out_p), lambda i: (i, 0))

    out_bytes = jnp.dtype(out_dtype).itemsize
    flops = 2 * Bp * (in_size * hidden + 2 * hidden * hidden + hidden * out_p)
    bytes_accessed = (
        Bp * in_size * 4
        + (packed["w1"].size + packed["w2"].size
           + packed["w3"].size + packed["w4"].size) * 2
        + (packed["b1"].size + packed["b2"].size
           + packed["b3"].size + packed["b4"].size) * 4
        + Bp * out_p * out_bytes)

    out_padded = pl.pallas_call(
        _mlp_kernel,
        out_shape=jax.ShapeDtypeStruct((Bp, out_p), out_dtype),
        grid=grid,
        in_specs=in_specs,
        out_specs=out_specs,
        compiler_params=pltpu.CompilerParams(
            dimension_semantics=("parallel",)),
        cost_estimate=pl.CostEstimate(
            flops=flops, transcendentals=0, bytes_accessed=bytes_accessed),
    )(x_p,
      packed["w1"], packed["b1"],
      packed["w2"], packed["b2"],
      packed["w3"], packed["b3"],
      packed["w4"], packed["b4"])

    # Strip batch / lane padding (fused by XLA; tiny vs. the kernel traffic).
    return out_padded[:B, :out_size]


def init_params(key, input_size=28 * 28, hidden_size=256, output_size=10):
    """Deterministic parameter init (PyTorch-Linear-style uniform bounds)."""
    sizes = [(input_size, hidden_size),
             (hidden_size, hidden_size),
             (hidden_size, hidden_size),
             (hidden_size, output_size)]
    params = {}
    for i, (fan_in, fan_out) in enumerate(sizes, start=1):
        key, kw, kb = jax.random.split(key, 3)
        bound = 1.0 / jnp.sqrt(jnp.asarray(fan_in, jnp.float32))
        params[f"w{i}"] = jax.random.uniform(
            kw, (fan_in, fan_out), jnp.float32, -bound, bound)
        # biases kept 2-D (1, out) so they broadcast cleanly over sublanes
        params[f"b{i}"] = jax.random.uniform(
            kb, (1, fan_out), jnp.float32, -bound, bound)
    return params


def _reference_forward_f32(x, params):
    h = jnp.maximum(x @ params["w1"] + params["b1"], 0.0)
    h = jnp.maximum(h @ params["w2"] + params["b2"], 0.0)
    h = jnp.maximum(h @ params["w3"] + params["b3"], 0.0)
    return h @ params["w4"] + params["b4"]


def _reference_forward_bf16(x, params):
    """Numerics-matched reference: bf16 operands, f32 accumulation."""
    def mm(a, w):
        return jnp.dot(a.astype(jnp.bfloat16), w.astype(jnp.bfloat16),
                       preferred_element_type=jnp.float32)
    h = jnp.maximum(mm(x, params["w1"]) + params["b1"], 0.0)
    h = jnp.maximum(mm(h, params["w2"]) + params["b2"], 0.0)
    h = jnp.maximum(mm(h, params["w3"]) + params["b3"], 0.0)
    return mm(h, params["w4"]) + params["b4"]


if __name__ == "__main__":
    key = jax.random.PRNGKey(0)
    key, kx = jax.random.split(key)

    B, INPUT, HIDDEN, OUTPUT = 8, 28 * 28, 256, 10
    x = jax.random.normal(kx, (B, INPUT), jnp.float32)
    params = init_params(key, INPUT, HIDDEN, OUTPUT)

    packed, out_size = prepare_params(params)

    out = network_forward(x, packed, out_size=out_size)
    out = jax.block_until_ready(out)
    assert out.shape == (B, OUTPUT)

    ref_bf16 = _reference_forward_bf16(x, params)
    ref_f32 = _reference_forward_f32(x, params)
    assert jnp.allclose(out, ref_bf16, atol=2e-2, rtol=2e-2), \
        float(jnp.max(jnp.abs(out - ref_bf16)))
    assert jnp.allclose(out, ref_f32, atol=8e-2, rtol=8e-2), \
        float(jnp.max(jnp.abs(out - ref_f32)))

    # Exercise a larger batch to cover the multi-step / 256-row-tile path.
    key, kx2 = jax.random.split(key)
    x_big = jax.random.normal(kx2, (600, INPUT), jnp.float32)
    out_big = jax.block_until_ready(
        network_forward(x_big, packed, out_size=out_size))
    assert out_big.shape == (600, OUTPUT)
    assert jnp.allclose(out_big, _reference_forward_bf16(x_big, params),
                        atol=2e-2, rtol=2e-2)

    print("KERNEL_OK")
</pallas_src>

<mosaic_0001>
module attributes {stable_mosaic.version = 11 : i64} {
  func.func @_mlp_kernel(%arg0: i32, %arg1: memref<16x784xf32, #tpu.memory_space<vmem>>, %arg2: memref<784x256xbf16, #tpu.memory_space<vmem>>, %arg3: memref<1x256xf32, #tpu.memory_space<vmem>>, %arg4: memref<256x256xbf16, #tpu.memory_space<vmem>>, %arg5: memref<1x256xf32, #tpu.memory_space<vmem>>, %arg6: memref<256x256xbf16, #tpu.memory_space<vmem>>, %arg7: memref<1x256xf32, #tpu.memory_space<vmem>>, %arg8: memref<256x128xbf16, #tpu.memory_space<vmem>>, %arg9: memref<1x128xf32, #tpu.memory_space<vmem>>, %arg10: memref<16x128xf32, #tpu.memory_space<vmem>>) attributes {dimension_semantics = [#tpu.dimension_semantics<parallel>], iteration_bounds = array<i64: 1>, scalar_prefetch = 0 : i64, scratch_operands = 0 : i64, tpu.core_type = #tpu.core_type<tc>, window_params = [{transform_indices = @transform_0, window_bounds = array<i64: 16, 784>}, {pipeline_mode = #tpu.pipeline_mode<synchronous>, transform_indices = @transform_1, window_bounds = array<i64: 784, 256>}, {pipeline_mode = #tpu.pipeline_mode<synchronous>, transform_indices = @transform_2, window_bounds = array<i64: 1, 256>}, {pipeline_mode = #tpu.pipeline_mode<synchronous>, transform_indices = @transform_3, window_bounds = array<i64: 256, 256>}, {pipeline_mode = #tpu.pipeline_mode<synchronous>, transform_indices = @transform_4, window_bounds = array<i64: 1, 256>}, {pipeline_mode = #tpu.pipeline_mode<synchronous>, transform_indices = @transform_5, window_bounds = array<i64: 256, 256>}, {pipeline_mode = #tpu.pipeline_mode<synchronous>, transform_indices = @transform_6, window_bounds = array<i64: 1, 256>}, {pipeline_mode = #tpu.pipeline_mode<synchronous>, transform_indices = @transform_7, window_bounds = array<i64: 256, 128>}, {pipeline_mode = #tpu.pipeline_mode<synchronous>, transform_indices = @transform_8, window_bounds = array<i64: 1, 128>}, {transform_indices = @transform_9, window_bounds = array<i64: 16, 128>}]} {
    %c0 = arith.constant 0 : index
    %c0_0 = arith.constant 0 : index
    %0 = vector.load %arg1[%c0, %c0_0] : memref<16x784xf32, #tpu.memory_space<vmem>>, vector<16x784xf32>
    %1 = arith.truncf %0 : vector<16x784xf32> to vector<16x784xbf16>
    %c0_1 = arith.constant 0 : index
    %c0_2 = arith.constant 0 : index
    %2 = vector.load %arg2[%c0_1, %c0_2] : memref<784x256xbf16, #tpu.memory_space<vmem>>, vector<784x256xbf16>
    %cst = arith.constant dense<0.000000e+00> : vector<16x256xf32>
    %3 = tpu.matmul %1, %2, %cst {dimension_numbers = #tpu.dot_dimension_numbers<[1], [0], [0], [1], [0, 0, 1, 1], [], []>} : vector<16x784xbf16>, vector<784x256xbf16>, vector<16x256xf32> -> vector<16x256xf32>
    %c0_3 = arith.constant 0 : index
    %c0_4 = arith.constant 0 : index
    %4 = vector.load %arg3[%c0_3, %c0_4] : memref<1x256xf32, #tpu.memory_space<vmem>>, vector<1x256xf32>
    %5 = vector.broadcast %4 : vector<1x256xf32> to vector<16x256xf32>
    %6 = arith.addf %3, %5 : vector<16x256xf32>
    %cst_5 = arith.constant 0.000000e+00 : f32
    %7 = vector.broadcast %cst_5 : f32 to vector<16x256xf32>
    %8 = arith.maximumf %6, %7 : vector<16x256xf32>
    %9 = arith.truncf %8 : vector<16x256xf32> to vector<16x256xbf16>
    %c0_6 = arith.constant 0 : index
    %c0_7 = arith.constant 0 : index
    %10 = vector.load %arg4[%c0_6, %c0_7] : memref<256x256xbf16, #tpu.memory_space<vmem>>, vector<256x256xbf16>
    %cst_8 = arith.constant dense<0.000000e+00> : vector<16x256xf32>
    %11 = tpu.matmul %9, %10, %cst_8 {dimension_numbers = #tpu.dot_dimension_numbers<[1], [0], [0], [1], [0, 0, 1, 1], [], []>} : vector<16x256xbf16>, vector<256x256xbf16>, vector<16x256xf32> -> vector<16x256xf32>
    %c0_9 = arith.constant 0 : index
    %c0_10 = arith.constant 0 : index
    %12 = vector.load %arg5[%c0_9, %c0_10] : memref<1x256xf32, #tpu.memory_space<vmem>>, vector<1x256xf32>
    %13 = vector.broadcast %12 : vector<1x256xf32> to vector<16x256xf32>
    %14 = arith.addf %11, %13 : vector<16x256xf32>
    %cst_11 = arith.constant 0.000000e+00 : f32
    %15 = vector.broadcast %cst_11 : f32 to vector<16x256xf32>
    %16 = arith.maximumf %14, %15 : vector<16x256xf32>
    %17 = arith.truncf %16 : vector<16x256xf32> to vector<16x256xbf16>
    %c0_12 = arith.constant 0 : index
    %c0_13 = arith.constant 0 : index
    %18 = vector.load %arg6[%c0_12, %c0_13] : memref<256x256xbf16, #tpu.memory_space<vmem>>, vector<256x256xbf16>
    %cst_14 = arith.constant dense<0.000000e+00> : vector<16x256xf32>
    %19 = tpu.matmul %17, %18, %cst_14 {dimension_numbers = #tpu.dot_dimension_numbers<[1], [0], [0], [1], [0, 0, 1, 1], [], []>} : vector<16x256xbf16>, vector<256x256xbf16>, vector<16x256xf32> -> vector<16x256xf32>
    %c0_15 = arith.constant 0 : index
    %c0_16 = arith.constant 0 : index
    %20 = vector.load %arg7[%c0_15, %c0_16] : memref<1x256xf32, #tpu.memory_space<vmem>>, vector<1x256xf32>
    %21 = vector.broadcast %20 : vector<1x256xf32> to vector<16x256xf32>
    %22 = arith.addf %19, %21 : vector<16x256xf32>
    %cst_17 = arith.constant 0.000000e+00 : f32
    %23 = vector.broadcast %cst_17 : f32 to vector<16x256xf32>
    %24 = arith.maximumf %22, %23 : vector<16x256xf32>
    %25 = arith.truncf %24 : vector<16x256xf32> to vector<16x256xbf16>
    %c0_18 = arith.constant 0 : index
    %c0_19 = arith.constant 0 : index
    %26 = vector.load %arg8[%c0_18, %c0_19] : memref<256x128xbf16, #tpu.memory_space<vmem>>, vector<256x128xbf16>
    %cst_20 = arith.constant dense<0.000000e+00> : vector<16x128xf32>
    %27 = tpu.matmul %25, %26, %cst_20 {dimension_numbers = #tpu.dot_dimension_numbers<[1], [0], [0], [1], [0, 0, 1, 1], [], []>} : vector<16x256xbf16>, vector<256x128xbf16>, vector<16x128xf32> -> vector<16x128xf32>
    %c0_21 = arith.constant 0 : index
    %c0_22 = arith.constant 0 : index
    %28 = vector.load %arg9[%c0_21, %c0_22] : memref<1x128xf32, #tpu.memory_space<vmem>>, vector<1x128xf32>
    %29 = vector.broadcast %28 : vector<1x128xf32> to vector<16x128xf32>
    %30 = arith.addf %27, %29 : vector<16x128xf32>
    %c0_23 = arith.constant 0 : index
    %c0_24 = arith.constant 0 : index
    %31 = vector.load %arg10[%c0_23, %c0_24] : memref<16x128xf32, #tpu.memory_space<vmem>>, vector<16x128xf32>
    tpu.vector_store %arg10[%c0_23, %c0_24], %30 {strides = array<i32>} : memref<16x128xf32, #tpu.memory_space<vmem>>, vector<16x128xf32>,
    return
  }
  func.func @transform_0(%arg0: i32) -> (i32, i32) {
    %c0_i32 = arith.constant 0 : i32
    %c0_i32_0 = arith.constant 0 : i32
    return %arg0, %c0_i32 : i32, i32
  }
  func.func @transform_1(%arg0: i32) -> (i32, i32) {
    %c0_i32 = arith.constant 0 : i32
    %c0_i32_0 = arith.constant 0 : i32
    %c0_i32_1 = arith.constant 0 : i32
    return %c0_i32, %c0_i32_0 : i32, i32
  }
  func.func @transform_2(%arg0: i32) -> (i32, i32) {
    %c0_i32 = arith.constant 0 : i32
    %c0_i32_0 = arith.constant 0 : i32
    %c0_i32_1 = arith.constant 0 : i32
    return %c0_i32, %c0_i32_0 : i32, i32
  }
  func.func @transform_3(%arg0: i32) -> (i32, i32) {
    %c0_i32 = arith.constant 0 : i32
    %c0_i32_0 = arith.constant 0 : i32
    %c0_i32_1 = arith.constant 0 : i32
    return %c0_i32, %c0_i32_0 : i32, i32
  }
  func.func @transform_4(%arg0: i32) -> (i32, i32) {
    %c0_i32 = arith.constant 0 : i32
    %c0_i32_0 = arith.constant 0 : i32
    %c0_i32_1 = arith.constant 0 : i32
    return %c0_i32, %c0_i32_0 : i32, i32
  }
  func.func @transform_5(%arg0: i32) -> (i32, i32) {
    %c0_i32 = arith.constant 0 : i32
    %c0_i32_0 = arith.constant 0 : i32
    %c0_i32_1 = arith.constant 0 : i32
    return %c0_i32, %c0_i32_0 : i32, i32
  }
  func.func @transform_6(%arg0: i32) -> (i32, i32) {
    %c0_i32 = arith.constant 0 : i32
    %c0_i32_0 = arith.constant 0 : i32
    %c0_i32_1 = arith.constant 0 : i32
    return %c0_i32, %c0_i32_0 : i32, i32
  }
  func.func @transform_7(%arg0: i32) -> (i32, i32) {
    %c0_i32 = arith.constant 0 : i32
    %c0_i32_0 = arith.constant 0 : i32
    %c0_i32_1 = arith.constant 0 : i32
    return %c0_i32, %c0_i32_0 : i32, i32
  }
  func.func @transform_8(%arg0: i32) -> (i32, i32) {
    %c0_i32 = arith.constant 0 : i32
    %c0_i32_0 = arith.constant 0 : i32
    %c0_i32_1 = arith.constant 0 : i32
    return %c0_i32, %c0_i32_0 : i32, i32
  }
  func.func @transform_9(%arg0: i32) -> (i32, i32) {
    %c0_i32 = arith.constant 0 : i32
    %c0_i32_0 = arith.constant 0 : i32
    return %arg0, %c0_i32 : i32, i32
  }
}

</mosaic_0001>

<llo_original>
// kernel: network_forward.1
$region0: #{network_forward.1}
  #allocation0 [shape = 'u32[]', space=smem, size = 0x4, offset = 0x4, fixed_abs, tag = 'smem constant byte address 0x4 - core index']
  #allocation1 [shape = 'u32[144,128]{1,0:T(1,128)}', space=vmem, size = 0x12000, scoped, tag = 'internal scratch']
  %s0 = inlined_call_operand.vmem [shape: f32[16,784], index: 0, kind: input, shape index: {}]
  %s1 = inlined_call_operand.hbm [shape: bf16[784,256], index: 1, kind: input, shape index: {}]
  %s2 = inlined_call_operand.vmem [shape: f32[1,256], index: 2, kind: input, shape index: {}]
  %s3 = inlined_call_operand.hbm [shape: bf16[256,256], index: 3, kind: input, shape index: {}]
  %s4 = inlined_call_operand.vmem [shape: f32[1,256], index: 4, kind: input, shape index: {}]
  %s5 = inlined_call_operand.hbm [shape: bf16[256,256], index: 5, kind: input, shape index: {}]
  %s6 = inlined_call_operand.vmem [shape: f32[1,256], index: 6, kind: input, shape index: {}]
  %s7 = inlined_call_operand.vmem [shape: bf16[256,128], index: 7, kind: input, shape index: {}]
  %s8 = inlined_call_operand.vmem [shape: f32[1,128], index: 8, kind: input, shape index: {}]
  %s9 = inlined_call_operand.vmem [shape: f32[16,128], index: 9, kind: output, shape index: {}]
  %s10 = sld [smem:[#allocation0]]
  $region58: #{network_forward.1} parent=0
    _
  %s12 = ssub.s32 1, %s10
  %s13 = scalar_select 0, %s12, %s10
  $region1: #{network_forward.1} parent=0
    #allocation2 [shape = 'u8[401408]{0}', space=vmem, size = 0x62000, scoped, tag = 'input window, operand 1, single buffered']
    #allocation3 [shape = 's32[1]{0}', space=sflag, size = 0x4, scoped, tag = 'scoped memory for network_forward.1']
    #allocation4 [shape = 'u8[131072]{0}', space=vmem, size = 0x20000, scoped, tag = 'input window, operand 3, single buffered']
    #allocation5 [shape = 's32[1]{0}', space=sflag, size = 0x4, scoped, tag = 'scoped memory for network_forward.1']
    #allocation6 [shape = 'u8[131072]{0}', space=vmem, size = 0x20000, scoped, tag = 'input window, operand 5, single buffered']
    %14 = vsyncpa [#allocation3], 0
    %15 = vsyncpa [#allocation5], 0
    // Predicated region
    $region2: #{network_forward.1} parent=1 // pred_check
      _
    $region3: #{network_forward.1} parent=1 // pred_check_branch
      %17 = sbr.rel (0) target = $region5
    $region4: #{network_forward.1} parent=1 // pred_region
      _
    $region5: #{network_forward.1} parent=1 // pred_fallthru
      _
    // Predicated region
    $region6: #{network_forward.1} parent=1 // pred_check
      _
    $region7: #{network_forward.1} parent=1 // pred_check_branch
      %19 = sbr.rel (0) target = $region9
    $region8: #{network_forward.1} parent=1 // pred_region
      %s21 = ssub.s32 12544, 12544
      %22 = vsyncadd [#allocation3], %s21
      %s23 = sshll.u32 [#allocation2], 4
      %s24 = int_to_ptr.vmem [resolvable:$true] %s23
      %29 = dma.hbm_to_vmem [thread:$0]  %s1, 12544, %s24, [#allocation3], 128, 128, 8
    $region9: #{network_forward.1} parent=1 // pred_fallthru
      _
    // Predicated region
    $region10: #{network_forward.1} parent=1 // pred_check
      _
    $region11: #{network_forward.1} parent=1 // pred_check_branch
      %31 = sbr.rel (0) target = $region13
    $region12: #{network_forward.1} parent=1 // pred_region
      _
    $region13: #{network_forward.1} parent=1 // pred_fallthru
      _
    // Predicated region
    $region14: #{network_forward.1} parent=1 // pred_check
      _
    $region15: #{network_forward.1} parent=1 // pred_check_branch
      %33 = sbr.rel (0) target = $region17
    $region16: #{network_forward.1} parent=1 // pred_region
      %s35 = ssub.s32 4096, 4096
      %36 = vsyncadd [#allocation5], %s35
      %s37 = sshll.u32 [#allocation4], 4
      %s38 = int_to_ptr.vmem [resolvable:$true] %s37
      %43 = dma.hbm_to_vmem [thread:$0]  %s3, 4096, %s38, [#allocation5], 128, 128, 8
    $region17: #{network_forward.1} parent=1 // pred_fallthru
      _
    // Predicated region
    $region18: #{network_forward.1} parent=1 // pred_check
      _
    $region19: #{network_forward.1} parent=1 // pred_check_branch
      %45 = sbr.rel (0) target = $region21
    $region20: #{network_forward.1} parent=1 // pred_region
      _
    $region21: #{network_forward.1} parent=1 // pred_fallthru
      _
    // Predicated region
    $region22: #{network_forward.1} parent=1 // pred_check
      _
    $region23: #{network_forward.1} parent=1 // pred_check_branch
      %47 = sbr.rel (0) target = $region25
    $region24: #{network_forward.1} parent=1 // pred_region
      %s49 = ssub.s32 4096, 4096
      %50 = vsyncadd [#allocation5], %s49
      %s51 = sshll.u32 [#allocation6], 4
      %s52 = int_to_ptr.vmem [resolvable:$true] %s51
      %57 = dma.hbm_to_vmem [thread:$0]  %s5, 4096, %s52, [#allocation5], 128, 128, 8
    $region25: #{network_forward.1} parent=1 // pred_fallthru
      _
    // Predicated region
    $region26: #{network_forward.1} parent=1 // pred_check
      _
    $region27: #{network_forward.1} parent=1 // pred_check_branch
      %59 = sbr.rel (0) target = $region29
    $region28: #{network_forward.1} parent=1 // pred_region
      _
    $region29: #{network_forward.1} parent=1 // pred_fallthru
      _
    // Predicated region
    $region30: #{network_forward.1} parent=1 // pred_check
      _
    $region31: #{network_forward.1} parent=1 // pred_check_branch
      %61 = sbr.rel (0) target = $region33
    $region32: #{network_forward.1} parent=1 // pred_region
      _
    $region33: #{network_forward.1} parent=1 // pred_fallthru
      _
    // Predicated region
    $region34: #{network_forward.1} parent=1 // pred_check
      _
    $region35: #{network_forward.1} parent=1 // pred_check_branch
      %63 = sbr.rel (0) target = $region37
    $region36: #{network_forward.1} parent=1 // pred_region
      _
    $region37: #{network_forward.1} parent=1 // pred_fallthru
      _
    // Predicated region
    $region38: #{network_forward.1} parent=1 // pred_check
      _
    $region39: #{network_forward.1} parent=1 // pred_check_branch
      %65 = sbr.rel (0) target = $region41
    $region40: #{network_forward.1} parent=1 // pred_region
      %66 = dma.done [#allocation3], 12544
    $region41: #{network_forward.1} parent=1 // pred_fallthru
      _
    // Predicated region
    $region42: #{network_forward.1} parent=1 // pred_check
      _
    $region43: #{network_forward.1} parent=1 // pred_check_branch
      %68 = sbr.rel (0) target = $region45
    $region44: #{network_forward.1} parent=1 // pred_region
      %69 = dma.done [#allocation5], 4096
    $region45: #{network_forward.1} parent=1 // pred_fallthru
      _
    // Predicated region
    $region46: #{network_forward.1} parent=1 // pred_check
      _
    $region47: #{network_forward.1} parent=1 // pred_check_branch
      %71 = sbr.rel (0) target = $region49
    $region48: #{network_forward.1} parent=1 // pred_region
      %72 = dma.done [#allocation5], 4096
    $region49: #{network_forward.1} parent=1 // pred_fallthru
      _
    %v74 = vld [vmem:[%s0] sm:$0xff]
    %v75 = vld [vmem:[%s0 + $0x8] sm:$0xff]
    %v76 = vld [vmem:[%s0 + $0x10] sm:$0xff]
    %v77 = vld [vmem:[%s0 + $0x18] sm:$0xff]
    %v78 = vld [vmem:[%s0 + $0x20] sm:$0xff]
    %v79 = vld [vmem:[%s0 + $0x28] sm:$0xff]
    %v80 = vld [vmem:[%s0 + $0x30] sm:$0xff]
    %v81 = vld [vmem:[%s0 + $0x38] sm:$0xff]
    %v82 = vld [vmem:[%s0 + $0x40] sm:$0xff]
    %v83 = vld [vmem:[%s0 + $0x48] sm:$0xff]
    %v84 = vld [vmem:[%s0 + $0x50] sm:$0xff]
    %v85 = vld [vmem:[%s0 + $0x58] sm:$0xff]
    %v86 = vld [vmem:[%s0 + $0x60] sm:$0xff]
    %v87 = vld [vmem:[%s0 + $0x68] sm:$0xff]
    %v88 = vpack.c.bf16 %v81, %v74
    %v89 = vpack.c.bf16 %v82, %v75
    %v90 = vpack.c.bf16 %v83, %v76
    %v91 = vpack.c.bf16 %v84, %v77
    %v92 = vpack.c.bf16 %v85, %v78
    %v93 = vpack.c.bf16 %v86, %v79
    %v94 = vpack.c.bf16 %v87, %v80
    %v95 = vld [vmem:[#allocation2] sm:$0xff]
    %v96 = vld [vmem:[#allocation2 + $0x8] sm:$0xff]
    %v97 = vld [vmem:[#allocation2 + $0x10] sm:$0xff]
    %v98 = vld [vmem:[#allocation2 + $0x18] sm:$0xff]
    %v99 = vld [vmem:[#allocation2 + $0x20] sm:$0xff]
    %v100 = vld [vmem:[#allocation2 + $0x28] sm:$0xff]
    %v101 = vld [vmem:[#allocation2 + $0x30] sm:$0xff]
    %v102 = vld [vmem:[#allocation2 + $0x38] sm:$0xff]
    %v103 = vld [vmem:[#allocation2 + $0x40] sm:$0xff]
    %v104 = vld [vmem:[#allocation2 + $0x48] sm:$0xff]
    %v105 = vld [vmem:[#allocation2 + $0x50] sm:$0xff]
    %v106 = vld [vmem:[#allocation2 + $0x58] sm:$0xff]
    %v107 = vld [vmem:[#allocation2 + $0x60] sm:$0xff]
    %v108 = vld [vmem:[#allocation2 + $0x68] sm:$0xff]
    %v109 = vld [vmem:[#allocation2 + $0x70] sm:$0xff]
    %v110 = vld [vmem:[#allocation2 + $0x78] sm:$0xff]
    %v111 = vld [vmem:[#allocation2 + $0x80] sm:$0xff]
    %v112 = vld [vmem:[#allocation2 + $0x88] sm:$0xff]
    %v113 = vld [vmem:[#allocation2 + $0x90] sm:$0xff]
    %v114 = vld [vmem:[#allocation2 + $0x98] sm:$0xff]
    %v115 = vld [vmem:[#allocation2 + $0xa0] sm:$0xff]
    %v116 = vld [vmem:[#allocation2 + $0xa8] sm:$0xff]
    %v117 = vld [vmem:[#allocation2 + $0xb0] sm:$0xff]
    %v118 = vld [vmem:[#allocation2 + $0xb8] sm:$0xff]
    %v119 = vld [vmem:[#allocation2 + $0xc0] sm:$0xff]
    %v120 = vld [vmem:[#allocation2 + $0xc8] sm:$0xff]
    %v121 = vld [vmem:[#allocation2 + $0xd0] sm:$0xff]
    %v122 = vld [vmem:[#allocation2 + $0xd8] sm:$0xff]
    %v123 = vld [vmem:[#allocation2 + $0xe0] sm:$0xff]
    %v124 = vld [vmem:[#allocation2 + $0xe8] sm:$0xff]
    %v125 = vld [vmem:[#allocation2 + $0xf0] sm:$0xff]
    %v126 = vld [vmem:[#allocation2 + $0xf8] sm:$0xff]
    %v127 = vld [vmem:[#allocation2 + $0x100] sm:$0xff]
    %v128 = vld [vmem:[#allocation2 + $0x108] sm:$0xff]
    %v129 = vld [vmem:[#allocation2 + $0x110] sm:$0xff]
    %v130 = vld [vmem:[#allocation2 + $0x118] sm:$0xff]
    %v131 = vld [vmem:[#allocation2 + $0x120] sm:$0xff]
    %v132 = vld [vmem:[#allocation2 + $0x128] sm:$0xff]
    %v133 = vld [vmem:[#allocation2 + $0x130] sm:$0xff]
    %v134 = vld [vmem:[#allocation2 + $0x138] sm:$0xff]
    %v135 = vld [vmem:[#allocation2 + $0x140] sm:$0xff]
    %v136 = vld [vmem:[#allocation2 + $0x148] sm:$0xff]
    %v137 = vld [vmem:[#allocation2 + $0x150] sm:$0xff]
    %v138 = vld [vmem:[#allocation2 + $0x158] sm:$0xff]
    %v139 = vld [vmem:[#allocation2 + $0x160] sm:$0xff]
    %v140 = vld [vmem:[#allocation2 + $0x168] sm:$0xff]
    %v141 = vld [vmem:[#allocation2 + $0x170] sm:$0xff]
    %v142 = vld [vmem:[#allocation2 + $0x178] sm:$0xff]
    %v143 = vld [vmem:[#allocation2 + $0x180] sm:$0xff]
    %v144 = vld [vmem:[#allocation2 + $0x188] sm:$0xff]
    %v145 = vld [vmem:[#allocation2 + $0x190] sm:$0xff]
    %v146 = vld [vmem:[#allocation2 + $0x198] sm:$0xff]
    %v147 = vld [vmem:[#allocation2 + $0x1a0] sm:$0xff]
    %v148 = vld [vmem:[#allocation2 + $0x1a8] sm:$0xff]
    %v149 = vld [vmem:[#allocation2 + $0x1b0] sm:$0xff]
    %v150 = vld [vmem:[#allocation2 + $0x1b8] sm:$0xff]
    %v151 = vld [vmem:[#allocation2 + $0x1c0] sm:$0xff]
    %v152 = vld [vmem:[#allocation2 + $0x1c8] sm:$0xff]
    %v153 = vld [vmem:[#allocation2 + $0x1d0] sm:$0xff]
    %v154 = vld [vmem:[#allocation2 + $0x1d8] sm:$0xff]
    %v155 = vld [vmem:[#allocation2 + $0x1e0] sm:$0xff]
    %v156 = vld [vmem:[#allocation2 + $0x1e8] sm:$0xff]
    %v157 = vld [vmem:[#allocation2 + $0x1f0] sm:$0xff]
    %v158 = vld [vmem:[#allocation2 + $0x1f8] sm:$0xff]
    %v159 = vld [vmem:[#allocation2 + $0x200] sm:$0xff]
    %v160 = vld [vmem:[#allocation2 + $0x208] sm:$0xff]
    %v161 = vld [vmem:[#allocation2 + $0x210] sm:$0xff]
    %v162 = vld [vmem:[#allocation2 + $0x218] sm:$0xff]
    %v163 = vld [vmem:[#allocation2 + $0x220] sm:$0xff]
    %v164 = vld [vmem:[#allocation2 + $0x228] sm:$0xff]
    %v165 = vld [vmem:[#allocation2 + $0x230] sm:$0xff]
    %v166 = vld [vmem:[#allocation2 + $0x238] sm:$0xff]
    %v167 = vld [vmem:[#allocation2 + $0x240] sm:$0xff]
    %v168 = vld [vmem:[#allocation2 + $0x248] sm:$0xff]
    %v169 = vld [vmem:[#allocation2 + $0x250] sm:$0xff]
    %v170 = vld [vmem:[#allocation2 + $0x258] sm:$0xff]
    %v171 = vld [vmem:[#allocation2 + $0x260] sm:$0xff]
    %v172 = vld [vmem:[#allocation2 + $0x268] sm:$0xff]
    %v173 = vld [vmem:[#allocation2 + $0x270] sm:$0xff]
    %v174 = vld [vmem:[#allocation2 + $0x278] sm:$0xff]
    %v175 = vld [vmem:[#allocation2 + $0x280] sm:$0xff]
    %v176 = vld [vmem:[#allocation2 + $0x288] sm:$0xff]
    %v177 = vld [vmem:[#allocation2 + $0x290] sm:$0xff]
    %v178 = vld [vmem:[#allocation2 + $0x298] sm:$0xff]
    %v179 = vld [vmem:[#allocation2 + $0x2a0] sm:$0xff]
    %v180 = vld [vmem:[#allocation2 + $0x2a8] sm:$0xff]
    %v181 = vld [vmem:[#allocation2 + $0x2b0] sm:$0xff]
    %v182 = vld [vmem:[#allocation2 + $0x2b8] sm:$0xff]
    %v183 = vld [vmem:[#allocation2 + $0x2c0] sm:$0xff]
    %v184 = vld [vmem:[#allocation2 + $0x2c8] sm:$0xff]
    %v185 = vld [vmem:[#allocation2 + $0x2d0] sm:$0xff]
    %v186 = vld [vmem:[#allocation2 + $0x2d8] sm:$0xff]
    %v187 = vld [vmem:[#allocation2 + $0x2e0] sm:$0xff]
    %v188 = vld [vmem:[#allocation2 + $0x2e8] sm:$0xff]
    %v189 = vld [vmem:[#allocation2 + $0x2f0] sm:$0xff]
    %v190 = vld [vmem:[#allocation2 + $0x2f8] sm:$0xff]
    %v191 = vld [vmem:[#allocation2 + $0x300] sm:$0xff]
    %v192 = vld [vmem:[#allocation2 + $0x308] sm:$0xff]
    %v193 = vld [vmem:[%s2] sm:$0x3]
    %v195 = vlaneseq
    %v196 = vshrl.u32 %v195, 7
    %v197 = vsub.s32 0, %v196
    %v198 = vrot.slane %v193, %v197
    %v199 = vlaneseq
    %v200 = vshrl.u32 %v199, 7
    %v201 = vsub.s32 1, %v200
    %v202 = vrot.slane %v193, %v201
    %v303 = vunpack.c.l.b16 %v95
    %v304 = vunpack.c.h.b16 %v95
    %v305 = vunpack.c.l.b16 %v96
    %v306 = vunpack.c.h.b16 %v96
    %v307 = vunpack.c.l.b16 %v97
    %v308 = vunpack.c.h.b16 %v97
    %v309 = vunpack.c.l.b16 %v98
    %v310 = vunpack.c.h.b16 %v98
    %v311 = vunpack.c.l.b16 %v99
    %v312 = vunpack.c.h.b16 %v99
    %v313 = vunpack.c.l.b16 %v100
    %v314 = vunpack.c.h.b16 %v100
    %v315 = vunpack.c.l.b16 %v101
    %v316 = vunpack.c.h.b16 %v101
    %v317 = vunpack.c.l.b16 %v102
    %v318 = vunpack.c.h.b16 %v102
    %v319 = vunpack.c.l.b16 %v103
    %v320 = vunpack.c.h.b16 %v103
    %v321 = vunpack.c.l.b16 %v104
    %v322 = vunpack.c.h.b16 %v104
    %v323 = vunpack.c.l.b16 %v105
    %v324 = vunpack.c.h.b16 %v105
    %v325 = vunpack.c.l.b16 %v106
    %v326 = vunpack.c.h.b16 %v106
    %v327 = vunpack.c.l.b16 %v107
    %v328 = vunpack.c.h.b16 %v107
    %v329 = vunpack.c.l.b16 %v108
    %v330 = vunpack.c.h.b16 %v108
    %v331 = vunpack.c.l.b16 %v109
    %v332 = vunpack.c.h.b16 %v109
    %v333 = vunpack.c.l.b16 %v110
    %v334 = vunpack.c.h.b16 %v110
    %v335 = vunpack.c.l.b16 %v111
    %v336 = vunpack.c.h.b16 %v111
    %v337 = vunpack.c.l.b16 %v112
    %v338 = vunpack.c.h.b16 %v112
    %v339 = vunpack.c.l.b16 %v113
    %v340 = vunpack.c.h.b16 %v113
    %v341 = vunpack.c.l.b16 %v114
    %v342 = vunpack.c.h.b16 %v114
    %v343 = vunpack.c.l.b16 %v115
    %v344 = vunpack.c.h.b16 %v115
    %v345 = vunpack.c.l.b16 %v116
    %v346 = vunpack.c.h.b16 %v116
    %v347 = vunpack.c.l.b16 %v117
    %v348 = vunpack.c.h.b16 %v117
    %v349 = vunpack.c.l.b16 %v118
    %v350 = vunpack.c.h.b16 %v118
    %v351 = vunpack.c.l.b16 %v119
    %v352 = vunpack.c.h.b16 %v119
    %v353 = vunpack.c.l.b16 %v120
    %v354 = vunpack.c.h.b16 %v120
    %v355 = vunpack.c.l.b16 %v121
    %v356 = vunpack.c.h.b16 %v121
    %v357 = vunpack.c.l.b16 %v122
    %v358 = vunpack.c.h.b16 %v122
    %v359 = vunpack.c.l.b16 %v123
    %v360 = vunpack.c.h.b16 %v123
    %v361 = vunpack.c.l.b16 %v124
    %v362 = vunpack.c.h.b16 %v124
    %v363 = vunpack.c.l.b16 %v125
    %v364 = vunpack.c.h.b16 %v125
    %v365 = vunpack.c.l.b16 %v126
    %v366 = vunpack.c.h.b16 %v126
    %v367 = vunpack.c.l.b16 %v127
    %v368 = vunpack.c.h.b16 %v127
    %v369 = vunpack.c.l.b16 %v128
    %v370 = vunpack.c.h.b16 %v128
    %v371 = vunpack.c.l.b16 %v129
    %v372 = vunpack.c.h.b16 %v129
    %v373 = vunpack.c.l.b16 %v130
    %v374 = vunpack.c.h.b16 %v130
    %v375 = vunpack.c.l.b16 %v131
    %v376 = vunpack.c.h.b16 %v131
    %v377 = vunpack.c.l.b16 %v132
    %v378 = vunpack.c.h.b16 %v132
    %v379 = vunpack.c.l.b16 %v133
    %v380 = vunpack.c.h.b16 %v133
    %v381 = vunpack.c.l.b16 %v134
    %v382 = vunpack.c.h.b16 %v134
    %v383 = vunpack.c.l.b16 %v135
    %v384 = vunpack.c.h.b16 %v135
    %v385 = vunpack.c.l.b16 %v136
    %v386 = vunpack.c.h.b16 %v136
    %v387 = vunpack.c.l.b16 %v137
    %v388 = vunpack.c.h.b16 %v137
    %v389 = vunpack.c.l.b16 %v138
    %v390 = vunpack.c.h.b16 %v138
    %v391 = vunpack.c.l.b16 %v139
    %v392 = vunpack.c.h.b16 %v139
    %v393 = vunpack.c.l.b16 %v140
    %v394 = vunpack.c.h.b16 %v140
    %v395 = vunpack.c.l.b16 %v141
    %v396 = vunpack.c.h.b16 %v141
    %v397 = vunpack.c.l.b16 %v142
    %v398 = vunpack.c.h.b16 %v142
    %v399 = vunpack.c.l.b16 %v143
    %v400 = vunpack.c.h.b16 %v143
    %v401 = vunpack.c.l.b16 %v144
    %v402 = vunpack.c.h.b16 %v144
    %v403 = vunpack.c.l.b16 %v145
    %v404 = vunpack.c.h.b16 %v145
    %v405 = vunpack.c.l.b16 %v146
    %v406 = vunpack.c.h.b16 %v146
    %v407 = vunpack.c.l.b16 %v147
    %v408 = vunpack.c.h.b16 %v147
    %v409 = vunpack.c.l.b16 %v148
    %v410 = vunpack.c.h.b16 %v148
    %v411 = vunpack.c.l.b16 %v149
    %v412 = vunpack.c.h.b16 %v149
    %v413 = vunpack.c.l.b16 %v150
    %v414 = vunpack.c.h.b16 %v150
    %v415 = vunpack.c.l.b16 %v151
    %v416 = vunpack.c.h.b16 %v151
    %v417 = vunpack.c.l.b16 %v152
    %v418 = vunpack.c.h.b16 %v152
    %v419 = vunpack.c.l.b16 %v153
    %v420 = vunpack.c.h.b16 %v153
    %v421 = vunpack.c.l.b16 %v154
    %v422 = vunpack.c.h.b16 %v154
    %v423 = vunpack.c.l.b16 %v155
    %v424 = vunpack.c.h.b16 %v155
    %v425 = vunpack.c.l.b16 %v156
    %v426 = vunpack.c.h.b16 %v156
    %v427 = vunpack.c.l.b16 %v157
    %v428 = vunpack.c.h.b16 %v157
    %v429 = vunpack.c.l.b16 %v158
    %v430 = vunpack.c.h.b16 %v158
    %v431 = vunpack.c.l.b16 %v159
    %v432 = vunpack.c.h.b16 %v159
    %v433 = vunpack.c.l.b16 %v160
    %v434 = vunpack.c.h.b16 %v160
    %v435 = vunpack.c.l.b16 %v161
    %v436 = vunpack.c.h.b16 %v161
    %v437 = vunpack.c.l.b16 %v162
    %v438 = vunpack.c.h.b16 %v162
    %v439 = vunpack.c.l.b16 %v163
    %v440 = vunpack.c.h.b16 %v163
    %v441 = vunpack.c.l.b16 %v164
    %v442 = vunpack.c.h.b16 %v164
    %v443 = vunpack.c.l.b16 %v165
    %v444 = vunpack.c.h.b16 %v165
    %v445 = vunpack.c.l.b16 %v166
    %v446 = vunpack.c.h.b16 %v166
    %v447 = vunpack.c.l.b16 %v167
    %v448 = vunpack.c.h.b16 %v167
    %v449 = vunpack.c.l.b16 %v168
    %v450 = vunpack.c.h.b16 %v168
    %v451 = vunpack.c.l.b16 %v169
    %v452 = vunpack.c.h.b16 %v169
    %v453 = vunpack.c.l.b16 %v170
    %v454 = vunpack.c.h.b16 %v170
    %v455 = vunpack.c.l.b16 %v171
    %v456 = vunpack.c.h.b16 %v171
    %v457 = vunpack.c.l.b16 %v172
    %v458 = vunpack.c.h.b16 %v172
    %v459 = vunpack.c.l.b16 %v173
    %v460 = vunpack.c.h.b16 %v173
    %v461 = vunpack.c.l.b16 %v174
    %v462 = vunpack.c.h.b16 %v174
    %v463 = vunpack.c.l.b16 %v175
    %v464 = vunpack.c.h.b16 %v175
    %v465 = vunpack.c.l.b16 %v176
    %v466 = vunpack.c.h.b16 %v176
    %v467 = vunpack.c.l.b16 %v177
    %v468 = vunpack.c.h.b16 %v177
    %v469 = vunpack.c.l.b16 %v178
    %v470 = vunpack.c.h.b16 %v178
    %v471 = vunpack.c.l.b16 %v179
    %v472 = vunpack.c.h.b16 %v179
    %v473 = vunpack.c.l.b16 %v180
    %v474 = vunpack.c.h.b16 %v180
    %v475 = vunpack.c.l.b16 %v181
    %v476 = vunpack.c.h.b16 %v181
    %v477 = vunpack.c.l.b16 %v182
    %v478 = vunpack.c.h.b16 %v182
    %v479 = vunpack.c.l.b16 %v183
    %v480 = vunpack.c.h.b16 %v183
    %v481 = vunpack.c.l.b16 %v184
    %v482 = vunpack.c.h.b16 %v184
    %v483 = vunpack.c.l.b16 %v185
    %v484 = vunpack.c.h.b16 %v185
    %v485 = vunpack.c.l.b16 %v186
    %v486 = vunpack.c.h.b16 %v186
    %v487 = vunpack.c.l.b16 %v187
    %v488 = vunpack.c.h.b16 %v187
    %v489 = vunpack.c.l.b16 %v188
    %v490 = vunpack.c.h.b16 %v188
    %v491 = vunpack.c.l.b16 %v189
    %v492 = vunpack.c.h.b16 %v189
    %v493 = vunpack.c.l.b16 %v190
    %v494 = vunpack.c.h.b16 %v190
    %v495 = vunpack.c.l.b16 %v191
    %v496 = vunpack.c.h.b16 %v191
    %v497 = vunpack.c.l.b16 %v192
    %v498 = vunpack.c.h.b16 %v192
    %v499 = vpack.c.b16 %v305, %v303
    %v500 = vpack.c.b16 %v306, %v304
    %v501 = vpack.c.b16 %v309, %v307
    %v502 = vpack.c.b16 %v310, %v308
    %v503 = vpack.c.b16 %v313, %v311
    %v504 = vpack.c.b16 %v314, %v312
    %v505 = vpack.c.b16 %v317, %v315
    %v506 = vpack.c.b16 %v318, %v316
    %v507 = vpack.c.b16 %v321, %v319
    %v508 = vpack.c.b16 %v322, %v320
    %v509 = vpack.c.b16 %v325, %v323
    %v510 = vpack.c.b16 %v326, %v324
    %v511 = vpack.c.b16 %v329, %v327
    %v512 = vpack.c.b16 %v330, %v328
    %v513 = vpack.c.b16 %v333, %v331
    %v514 = vpack.c.b16 %v334, %v332
    %v515 = vpack.c.b16 %v337, %v335
    %v516 = vpack.c.b16 %v338, %v336
    %v517 = vpack.c.b16 %v341, %v339
    %v518 = vpack.c.b16 %v342, %v340
    %v519 = vpack.c.b16 %v345, %v343
    %v520 = vpack.c.b16 %v346, %v344
    %v521 = vpack.c.b16 %v349, %v347
    %v522 = vpack.c.b16 %v350, %v348
    %v523 = vpack.c.b16 %v353, %v351
    %v524 = vpack.c.b16 %v354, %v352
    %v525 = vpack.c.b16 %v357, %v355
    %v526 = vpack.c.b16 %v358, %v356
    %v527 = vpack.c.b16 %v361, %v359
    %v528 = vpack.c.b16 %v362, %v360
    %v529 = vpack.c.b16 %v365, %v363
    %v530 = vpack.c.b16 %v366, %v364
    %v531 = vpack.c.b16 %v369, %v367
    %v532 = vpack.c.b16 %v370, %v368
    %v533 = vpack.c.b16 %v373, %v371
    %v534 = vpack.c.b16 %v374, %v372
    %v535 = vpack.c.b16 %v377, %v375
    %v536 = vpack.c.b16 %v378, %v376
    %v537 = vpack.c.b16 %v381, %v379
    %v538 = vpack.c.b16 %v382, %v380
    %v539 = vpack.c.b16 %v385, %v383
    %v540 = vpack.c.b16 %v386, %v384
    %v541 = vpack.c.b16 %v389, %v387
    %v542 = vpack.c.b16 %v390, %v388
    %v543 = vpack.c.b16 %v393, %v391
    %v544 = vpack.c.b16 %v394, %v392
    %v545 = vpack.c.b16 %v397, %v395
    %v546 = vpack.c.b16 %v398, %v396
    %v547 = vpack.c.b16 %v401, %v399
    %v548 = vpack.c.b16 %v402, %v400
    %v549 = vpack.c.b16 %v405, %v403
    %v550 = vpack.c.b16 %v406, %v404
    %v551 = vpack.c.b16 %v409, %v407
    %v552 = vpack.c.b16 %v410, %v408
    %v553 = vpack.c.b16 %v413, %v411
    %v554 = vpack.c.b16 %v414, %v412
    %v555 = vpack.c.b16 %v417, %v415
    %v556 = vpack.c.b16 %v418, %v416
    %v557 = vpack.c.b16 %v421, %v419
    %v558 = vpack.c.b16 %v422, %v420
    %v559 = vpack.c.b16 %v425, %v423
    %v560 = vpack.c.b16 %v426, %v424
    %v561 = vpack.c.b16 %v429, %v427
    %v562 = vpack.c.b16 %v430, %v428
    %v563 = vpack.c.b16 %v433, %v431
    %v564 = vpack.c.b16 %v434, %v432
    %v565 = vpack.c.b16 %v437, %v435
    %v566 = vpack.c.b16 %v438, %v436
    %v567 = vpack.c.b16 %v441, %v439
    %v568 = vpack.c.b16 %v442, %v440
    %v569 = vpack.c.b16 %v445, %v443
    %v570 = vpack.c.b16 %v446, %v444
    %v571 = vpack.c.b16 %v449, %v447
    %v572 = vpack.c.b16 %v450, %v448
    %v573 = vpack.c.b16 %v453, %v451
    %v574 = vpack.c.b16 %v454, %v452
    %v575 = vpack.c.b16 %v457, %v455
    %v576 = vpack.c.b16 %v458, %v456
    %v577 = vpack.c.b16 %v461, %v459
    %v578 = vpack.c.b16 %v462, %v460
    %v579 = vpack.c.b16 %v465, %v463
    %v580 = vpack.c.b16 %v466, %v464
    %v581 = vpack.c.b16 %v469, %v467
    %v582 = vpack.c.b16 %v470, %v468
    %v583 = vpack.c.b16 %v473, %v471
    %v584 = vpack.c.b16 %v474, %v472
    %v585 = vpack.c.b16 %v477, %v475
    %v586 = vpack.c.b16 %v478, %v476
    %v587 = vpack.c.b16 %v481, %v479
    %v588 = vpack.c.b16 %v482, %v480
    %v589 = vpack.c.b16 %v485, %v483
    %v590 = vpack.c.b16 %v486, %v484
    %v591 = vpack.c.b16 %v489, %v487
    %v592 = vpack.c.b16 %v490, %v488
    %v593 = vpack.c.b16 %v493, %v491
    %v594 = vpack.c.b16 %v494, %v492
    %v595 = vpack.c.b16 %v497, %v495
    %v596 = vpack.c.b16 %v498, %v496
    %vm695 = vcmask 130048
    %v697 = vsel %vm695, %v94, 0
    %699 = vmatprep.subr.bf16.mxu0 %v500
    %700 = vmatpush1.bf16.msra.mxu0 %v499
    %701 = vmatprep.subr.bf16.mxu0 %v502
    %702 = vmatpush1.bf16.msra.mxu0 %v501
    %703 = vmatprep.subr.bf16.mxu0 %v504
    %704 = vmatpush1.bf16.msra.mxu0 %v503
    %705 = vmatprep.subr.bf16.mxu0 %v506
    %706 = vmatpush1.bf16.msra.mxu0 %v505
    %707 = vmatprep.subr.bf16.mxu0 %v508
    %708 = vmatpush1.bf16.msra.mxu0 %v507
    %709 = vmatprep.subr.bf16.mxu0 %v510
    %710 = vmatpush1.bf16.msra.mxu0 %v509
    %711 = vmatprep.subr.bf16.mxu0 %v512
    %712 = vmatpush1.bf16.msra.mxu0 %v511
    %713 = vmatprep.subr.bf16.mxu0 %v514
    %714 = vmatpush1.bf16.msra.mxu0 %v513
    %715 = vmatprep.subr.bf16.mxu0 %v516
    %716 = vmatpush1.bf16.msra.mxu0 %v515
    %717 = vmatprep.subr.bf16.mxu0 %v518
    %718 = vmatpush1.bf16.msra.mxu0 %v517
    %719 = vmatprep.subr.bf16.mxu0 %v520
    %720 = vmatpush1.bf16.msra.mxu0 %v519
    %721 = vmatprep.subr.bf16.mxu0 %v522
    %722 = vmatpush1.bf16.msra.mxu0 %v521
    %723 = vmatprep.subr.bf16.mxu0 %v524
    %724 = vmatpush1.bf16.msra.mxu0 %v523
    %725 = vmatprep.subr.bf16.mxu0 %v526
    %726 = vmatpush1.bf16.msra.mxu0 %v525
    %727 = vmatprep.subr.bf16.mxu0 %v528
    %728 = vmatpush1.bf16.msra.mxu0 %v527
    %729 = vmatprep.subr.bf16.mxu0 %v530
    %730 = vmatpush1.bf16.msra.mxu0 %v529
    %731 = vmatprep.mubr.bf16.mxu0 %v89
    %732 = vmatmul.mubr.bf16.gmra.mrb[0].mxu0 %v88
    %v733 = vpop.f32.mrb[0].mxu0
    %v734 = vadd.f32 %v198, %v733
    %v735 = vpop.f32.mrb[0].mxu0
    %v736 = vadd.f32 %v202, %v735
    %v737 = vpop.f32.mrb[0].mxu0
    %v738 = vadd.f32 %v198, %v737
    %v739 = vpop.f32.mrb[0].mxu0
    %v740 = vadd.f32 %v202, %v739
    %741 = vdwg.mxu0
    %742 = vmatprep.subr.bf16.mxu0 %v532
    %743 = vmatpush1.bf16.msra.mxu0 %v531
    %744 = vmatprep.subr.bf16.mxu0 %v534
    %745 = vmatpush1.bf16.msra.mxu0 %v533
    %746 = vmatprep.subr.bf16.mxu0 %v536
    %747 = vmatpush1.bf16.msra.mxu0 %v535
    %748 = vmatprep.subr.bf16.mxu0 %v538
    %749 = vmatpush1.bf16.msra.mxu0 %v537
    %750 = vmatprep.subr.bf16.mxu0 %v540
    %751 = vmatpush1.bf16.msra.mxu0 %v539
    %752 = vmatprep.subr.bf16.mxu0 %v542
    %753 = vmatpush1.bf16.msra.mxu0 %v541
    %754 = vmatprep.subr.bf16.mxu0 %v544
    %755 = vmatpush1.bf16.msra.mxu0 %v543
    %756 = vmatprep.subr.bf16.mxu0 %v546
    %757 = vmatpush1.bf16.msra.mxu0 %v545
    %758 = vmatprep.subr.bf16.mxu0 %v548
    %759 = vmatpush1.bf16.msra.mxu0 %v547
    %760 = vmatprep.subr.bf16.mxu0 %v550
    %761 = vmatpush1.bf16.msra.mxu0 %v549
    %762 = vmatprep.subr.bf16.mxu0 %v552
    %763 = vmatpush1.bf16.msra.mxu0 %v551
    %764 = vmatprep.subr.bf16.mxu0 %v554
    %765 = vmatpush1.bf16.msra.mxu0 %v553
    %766 = vmatprep.subr.bf16.mxu0 %v556
    %767 = vmatpush1.bf16.msra.mxu0 %v555
    %768 = vmatprep.subr.bf16.mxu0 %v558
    %769 = vmatpush1.bf16.msra.mxu0 %v557
    %770 = vmatprep.subr.bf16.mxu0 %v560
    %771 = vmatpush1.bf16.msra.mxu0 %v559
    %772 = vmatprep.subr.bf16.mxu0 %v562
    %773 = vmatpush1.bf16.msra.mxu0 %v561
    %774 = vmatprep.mubr.bf16.mxu0 %v91
    %775 = vmatmul.mubr.bf16.gmra.mrb[0].mxu0 %v90
    %v776 = vpop.f32.mrb[0].mxu0
    %v777 = vadd.f32 %v734, %v776
    %v778 = vpop.f32.mrb[0].mxu0
    %v779 = vadd.f32 %v736, %v778
    %v780 = vpop.f32.mrb[0].mxu0
    %v781 = vadd.f32 %v738, %v780
    %v782 = vpop.f32.mrb[0].mxu0
    %v783 = vadd.f32 %v740, %v782
    %784 = vdwg.mxu0
    %785 = vmatprep.subr.bf16.mxu0 %v564
    %786 = vmatpush1.bf16.msra.mxu0 %v563
    %787 = vmatprep.subr.bf16.mxu0 %v566
    %788 = vmatpush1.bf16.msra.mxu0 %v565
    %789 = vmatprep.subr.bf16.mxu0 %v568
    %790 = vmatpush1.bf16.msra.mxu0 %v567
    %791 = vmatprep.subr.bf16.mxu0 %v570
    %792 = vmatpush1.bf16.msra.mxu0 %v569
    %793 = vmatprep.subr.bf16.mxu0 %v572
    %794 = vmatpush1.bf16.msra.mxu0 %v571
    %795 = vmatprep.subr.bf16.mxu0 %v574
    %796 = vmatpush1.bf16.msra.mxu0 %v573
    %797 = vmatprep.subr.bf16.mxu0 %v576
    %798 = vmatpush1.bf16.msra.mxu0 %v575
    %799 = vmatprep.subr.bf16.mxu0 %v578
    %800 = vmatpush1.bf16.msra.mxu0 %v577
    %801 = vmatprep.subr.bf16.mxu0 %v580
    %802 = vmatpush1.bf16.msra.mxu0 %v579
    %803 = vmatprep.subr.bf16.mxu0 %v582
    %804 = vmatpush1.bf16.msra.mxu0 %v581
    %805 = vmatprep.subr.bf16.mxu0 %v584
    %806 = vmatpush1.bf16.msra.mxu0 %v583
    %807 = vmatprep.subr.bf16.mxu0 %v586
    %808 = vmatpush1.bf16.msra.mxu0 %v585
    %809 = vmatprep.subr.bf16.mxu0 %v588
    %810 = vmatpush1.bf16.msra.mxu0 %v587
    %811 = vmatprep.subr.bf16.mxu0 %v590
    %812 = vmatpush1.bf16.msra.mxu0 %v589
    %813 = vmatprep.subr.bf16.mxu0 %v592
    %814 = vmatpush1.bf16.msra.mxu0 %v591
    %815 = vmatprep.subr.bf16.mxu0 %v594
    %816 = vmatpush1.bf16.msra.mxu0 %v593
    %817 = vmatprep.mubr.bf16.mxu0 %v93
    %818 = vmatmul.mubr.bf16.gmra.mrb[0].mxu0 %v92
    %v819 = vpop.f32.mrb[0].mxu0
    %v820 = vadd.f32 %v777, %v819
    %v821 = vpop.f32.mrb[0].mxu0
    %v822 = vadd.f32 %v779, %v821
    %v823 = vpop.f32.mrb[0].mxu0
    %v824 = vadd.f32 %v781, %v823
    %v825 = vpop.f32.mrb[0].mxu0
    %v826 = vadd.f32 %v783, %v825
    %827 = vdwg.mxu0
    %828 = vmatprep.subr.bf16.mxu0 %v596
    %829 = vmatpush1.bf16.msra.mxu0 %v595
    %830 = vmatprep.subr.bf16.mxu0 0
    %831 = vmatpush1.bf16.msra.mxu0 0
    %832 = vmatprep.subr.bf16.mxu0 0
    %833 = vmatpush1.bf16.msra.mxu0 0
    %834 = vmatprep.subr.bf16.mxu0 0
    %835 = vmatpush1.bf16.msra.mxu0 0
    %836 = vmatprep.subr.bf16.mxu0 0
    %837 = vmatpush1.bf16.msra.mxu0 0
    %838 = vmatprep.subr.bf16.mxu0 0
    %839 = vmatpush1.bf16.msra.mxu0 0
    %840 = vmatprep.subr.bf16.mxu0 0
    %841 = vmatpush1.bf16.msra.mxu0 0
    %842 = vmatprep.subr.bf16.mxu0 0
    %843 = vmatpush1.bf16.msra.mxu0 0
    %844 = vmatprep.subr.bf16.mxu0 0
    %845 = vmatpush1.bf16.msra.mxu0 0
    %846 = vmatprep.subr.bf16.mxu0 0
    %847 = vmatpush1.bf16.msra.mxu0 0
    %848 = vmatprep.subr.bf16.mxu0 0
    %849 = vmatpush1.bf16.msra.mxu0 0
    %850 = vmatprep.subr.bf16.mxu0 0
    %851 = vmatpush1.bf16.msra.mxu0 0
    %852 = vmatprep.subr.bf16.mxu0 0
    %853 = vmatpush1.bf16.msra.mxu0 0
    %854 = vmatprep.subr.bf16.mxu0 0
    %855 = vmatpush1.bf16.msra.mxu0 0
    %856 = vmatprep.subr.bf16.mxu0 0
    %857 = vmatpush1.bf16.msra.mxu0 0
    %858 = vmatprep.subr.bf16.mxu0 0
    %859 = vmatpush1.bf16.msra.mxu0 0
    %860 = vmatprep.mubr.bf16.mxu0 0
    %861 = vmatmul.mubr.bf16.gmra.mrb[0].mxu0 %v697
    %v862 = vpop.f32.mrb[0].mxu0
    %v863 = vadd.f32 %v820, %v862
    %v864 = vpop.f32.mrb[0].mxu0
    %v865 = vadd.f32 %v822, %v864
    %v866 = vpop.f32.mrb[0].mxu0
    %v867 = vadd.f32 %v824, %v866
    %v868 = vpop.f32.mrb[0].mxu0
    %v869 = vadd.f32 %v826, %v868
    %870 = vdwg.mxu0
    %v871 = vmax.f32 %v863, 0.0
    %v872 = vmax.f32 %v865, 0.0
    %v873 = vmax.f32 %v867, 0.0
    %v874 = vmax.f32 %v869, 0.0
    %v875 = vpack.c.bf16 %v873, %v871
    %v876 = vpack.c.bf16 %v874, %v872
    %v877 = vld [vmem:[#allocation4] sm:$0xff]
    %v878 = vld [vmem:[#allocation4 + $0x8] sm:$0xff]
    %v879 = vld [vmem:[#allocation4 + $0x10] sm:$0xff]
    %v880 = vld [vmem:[#allocation4 + $0x18] sm:$0xff]
    %v881 = vld [vmem:[#allocation4 + $0x20] sm:$0xff]
    %v882 = vld [vmem:[#allocation4 + $0x28] sm:$0xff]
    %v883 = vld [vmem:[#allocation4 + $0x30] sm:$0xff]
    %v884 = vld [vmem:[#allocation4 + $0x38] sm:$0xff]
    %v885 = vld [vmem:[#allocation4 + $0x40] sm:$0xff]
    %v886 = vld [vmem:[#allocation4 + $0x48] sm:$0xff]
    %v887 = vld [vmem:[#allocation4 + $0x50] sm:$0xff]
    %v888 = vld [vmem:[#allocation4 + $0x58] sm:$0xff]
    %v889 = vld [vmem:[#allocation4 + $0x60] sm:$0xff]
    %v890 = vld [vmem:[#allocation4 + $0x68] sm:$0xff]
    %v891 = vld [vmem:[#allocation4 + $0x70] sm:$0xff]
    %v892 = vld [vmem:[#allocation4 + $0x78] sm:$0xff]
    %v893 = vld [vmem:[#allocation4 + $0x80] sm:$0xff]
    %v894 = vld [vmem:[#allocation4 + $0x88] sm:$0xff]
    %v895 = vld [vmem:[#allocation4 + $0x90] sm:$0xff]
    %v896 = vld [vmem:[#allocation4 + $0x98] sm:$0xff]
    %v897 = vld [vmem:[#allocation4 + $0xa0] sm:$0xff]
    %v898 = vld [vmem:[#allocation4 + $0xa8] sm:$0xff]
    %v899 = vld [vmem:[#allocation4 + $0xb0] sm:$0xff]
    %v900 = vld [vmem:[#allocation4 + $0xb8] sm:$0xff]
    %v901 = vld [vmem:[#allocation4 + $0xc0] sm:$0xff]
    %v902 = vld [vmem:[#allocation4 + $0xc8] sm:$0xff]
    %v903 = vld [vmem:[#allocation4 + $0xd0] sm:$0xff]
    %v904 = vld [vmem:[#allocation4 + $0xd8] sm:$0xff]
    %v905 = vld [vmem:[#allocation4 + $0xe0] sm:$0xff]
    %v906 = vld [vmem:[#allocation4 + $0xe8] sm:$0xff]
    %v907 = vld [vmem:[#allocation4 + $0xf0] sm:$0xff]
    %v908 = vld [vmem:[#allocation4 + $0xf8] sm:$0xff]
    %v909 = vld [vmem:[%s4] sm:$0x3]
    %v911 = vlaneseq
    %v912 = vshrl.u32 %v911, 7
    %v913 = vsub.s32 0, %v912
    %v914 = vrot.slane %v909, %v913
    %v915 = vlaneseq
    %v916 = vshrl.u32 %v915, 7
    %v917 = vsub.s32 1, %v916
    %v918 = vrot.slane %v909, %v917
    %v953 = vunpack.c.l.b16 %v877
    %v954 = vunpack.c.h.b16 %v877
    %v955 = vunpack.c.l.b16 %v878
    %v956 = vunpack.c.h.b16 %v878
    %v957 = vunpack.c.l.b16 %v879
    %v958 = vunpack.c.h.b16 %v879
    %v959 = vunpack.c.l.b16 %v880
    %v960 = vunpack.c.h.b16 %v880
    %v961 = vunpack.c.l.b16 %v881
    %v962 = vunpack.c.h.b16 %v881
    %v963 = vunpack.c.l.b16 %v882
    %v964 = vunpack.c.h.b16 %v882
    %v965 = vunpack.c.l.b16 %v883
    %v966 = vunpack.c.h.b16 %v883
    %v967 = vunpack.c.l.b16 %v884
    %v968 = vunpack.c.h.b16 %v884
    %v969 = vunpack.c.l.b16 %v885
    %v970 = vunpack.c.h.b16 %v885
    %v971 = vunpack.c.l.b16 %v886
    %v972 = vunpack.c.h.b16 %v886
    %v973 = vunpack.c.l.b16 %v887
    %v974 = vunpack.c.h.b16 %v887
    %v975 = vunpack.c.l.b16 %v888
    %v976 = vunpack.c.h.b16 %v888
    %v977 = vunpack.c.l.b16 %v889
    %v978 = vunpack.c.h.b16 %v889
    %v979 = vunpack.c.l.b16 %v890
    %v980 = vunpack.c.h.b16 %v890
    %v981 = vunpack.c.l.b16 %v891
    %v982 = vunpack.c.h.b16 %v891
    %v983 = vunpack.c.l.b16 %v892
    %v984 = vunpack.c.h.b16 %v892
    %v985 = vunpack.c.l.b16 %v893
    %v986 = vunpack.c.h.b16 %v893
    %v987 = vunpack.c.l.b16 %v894
    %v988 = vunpack.c.h.b16 %v894
    %v989 = vunpack.c.l.b16 %v895
    %v990 = vunpack.c.h.b16 %v895
    %v991 = vunpack.c.l.b16 %v896
    %v992 = vunpack.c.h.b16 %v896
    %v993 = vunpack.c.l.b16 %v897
    %v994 = vunpack.c.h.b16 %v897
    %v995 = vunpack.c.l.b16 %v898
    %v996 = vunpack.c.h.b16 %v898
    %v997 = vunpack.c.l.b16 %v899
    %v998 = vunpack.c.h.b16 %v899
    %v999 = vunpack.c.l.b16 %v900
    %v1000 = vunpack.c.h.b16 %v900
    %v1001 = vunpack.c.l.b16 %v901
    %v1002 = vunpack.c.h.b16 %v901
    %v1003 = vunpack.c.l.b16 %v902
    %v1004 = vunpack.c.h.b16 %v902
    %v1005 = vunpack.c.l.b16 %v903
    %v1006 = vunpack.c.h.b16 %v903
    %v1007 = vunpack.c.l.b16 %v904
    %v1008 = vunpack.c.h.b16 %v904
    %v1009 = vunpack.c.l.b16 %v905
    %v1010 = vunpack.c.h.b16 %v905
    %v1011 = vunpack.c.l.b16 %v906
    %v1012 = vunpack.c.h.b16 %v906
    %v1013 = vunpack.c.l.b16 %v907
    %v1014 = vunpack.c.h.b16 %v907
    %v1015 = vunpack.c.l.b16 %v908
    %v1016 = vunpack.c.h.b16 %v908
    %v1017 = vpack.c.b16 %v955, %v953
    %v1018 = vpack.c.b16 %v956, %v954
    %v1019 = vpack.c.b16 %v959, %v957
    %v1020 = vpack.c.b16 %v960, %v958
    %v1021 = vpack.c.b16 %v963, %v961
    %v1022 = vpack.c.b16 %v964, %v962
    %v1023 = vpack.c.b16 %v967, %v965
    %v1024 = vpack.c.b16 %v968, %v966
    %v1025 = vpack.c.b16 %v971, %v969
    %v1026 = vpack.c.b16 %v972, %v970
    %v1027 = vpack.c.b16 %v975, %v973
    %v1028 = vpack.c.b16 %v976, %v974
    %v1029 = vpack.c.b16 %v979, %v977
    %v1030 = vpack.c.b16 %v980, %v978
    %v1031 = vpack.c.b16 %v983, %v981
    %v1032 = vpack.c.b16 %v984, %v982
    %v1033 = vpack.c.b16 %v987, %v985
    %v1034 = vpack.c.b16 %v988, %v986
    %v1035 = vpack.c.b16 %v991, %v989
    %v1036 = vpack.c.b16 %v992, %v990
    %v1037 = vpack.c.b16 %v995, %v993
    %v1038 = vpack.c.b16 %v996, %v994
    %v1039 = vpack.c.b16 %v999, %v997
    %v1040 = vpack.c.b16 %v1000, %v998
    %v1041 = vpack.c.b16 %v1003, %v1001
    %v1042 = vpack.c.b16 %v1004, %v1002
    %v1043 = vpack.c.b16 %v1007, %v1005
    %v1044 = vpack.c.b16 %v1008, %v1006
    %v1045 = vpack.c.b16 %v1011, %v1009
    %v1046 = vpack.c.b16 %v1012, %v1010
    %v1047 = vpack.c.b16 %v1015, %v1013
    %v1048 = vpack.c.b16 %v1016, %v1014
    %1081 = vmatprep.subr.bf16.mxu0 %v1018
    %1082 = vmatpush1.bf16.msra.mxu0 %v1017
    %1083 = vmatprep.subr.bf16.mxu0 %v1020
    %1084 = vmatpush1.bf16.msra.mxu0 %v1019
    %1085 = vmatprep.subr.bf16.mxu0 %v1022
    %1086 = vmatpush1.bf16.msra.mxu0 %v1021
    %1087 = vmatprep.subr.bf16.mxu0 %v1024
    %1088 = vmatpush1.bf16.msra.mxu0 %v1023
    %1089 = vmatprep.subr.bf16.mxu0 %v1026
    %1090 = vmatpush1.bf16.msra.mxu0 %v1025
    %1091 = vmatprep.subr.bf16.mxu0 %v1028
    %1092 = vmatpush1.bf16.msra.mxu0 %v1027
    %1093 = vmatprep.subr.bf16.mxu0 %v1030
    %1094 = vmatpush1.bf16.msra.mxu0 %v1029
    %1095 = vmatprep.subr.bf16.mxu0 %v1032
    %1096 = vmatpush1.bf16.msra.mxu0 %v1031
    %1097 = vmatprep.subr.bf16.mxu0 %v1034
    %1098 = vmatpush1.bf16.msra.mxu0 %v1033
    %1099 = vmatprep.subr.bf16.mxu0 %v1036
    %1100 = vmatpush1.bf16.msra.mxu0 %v1035
    %1101 = vmatprep.subr.bf16.mxu0 %v1038
    %1102 = vmatpush1.bf16.msra.mxu0 %v1037
    %1103 = vmatprep.subr.bf16.mxu0 %v1040
    %1104 = vmatpush1.bf16.msra.mxu0 %v1039
    %1105 = vmatprep.subr.bf16.mxu0 %v1042
    %1106 = vmatpush1.bf16.msra.mxu0 %v1041
    %1107 = vmatprep.subr.bf16.mxu0 %v1044
    %1108 = vmatpush1.bf16.msra.mxu0 %v1043
    %1109 = vmatprep.subr.bf16.mxu0 %v1046
    %1110 = vmatpush1.bf16.msra.mxu0 %v1045
    %1111 = vmatprep.subr.bf16.mxu0 %v1048
    %1112 = vmatpush1.bf16.msra.mxu0 %v1047
    %1113 = vmatprep.mubr.bf16.mxu0 %v876
    %1114 = vmatmul.mubr.bf16.gmra.mrb[0].mxu0 %v875
    %v1115 = vpop.f32.mrb[0].mxu0
    %v1116 = vadd.f32 %v914, %v1115
    %v1117 = vpop.f32.mrb[0].mxu0
    %v1118 = vadd.f32 %v918, %v1117
    %v1119 = vpop.f32.mrb[0].mxu0
    %v1120 = vadd.f32 %v914, %v1119
    %v1121 = vpop.f32.mrb[0].mxu0
    %v1122 = vadd.f32 %v918, %v1121
    %1123 = vdwg.mxu0
    %v1124 = vmax.f32 %v1116, 0.0
    %v1125 = vmax.f32 %v1118, 0.0
    %v1126 = vmax.f32 %v1120, 0.0
    %v1127 = vmax.f32 %v1122, 0.0
    %v1128 = vpack.c.bf16 %v1126, %v1124
    %v1129 = vpack.c.bf16 %v1127, %v1125
    %v1130 = vld [vmem:[#allocation6] sm:$0xff]
    %v1131 = vld [vmem:[#allocation6 + $0x8] sm:$0xff]
    %v1132 = vld [vmem:[#allocation6 + $0x10] sm:$0xff]
    %v1133 = vld [vmem:[#allocation6 + $0x18] sm:$0xff]
    %v1134 = vld [vmem:[#allocation6 + $0x20] sm:$0xff]
    %v1135 = vld [vmem:[#allocation6 + $0x28] sm:$0xff]
    %v1136 = vld [vmem:[#allocation6 + $0x30] sm:$0xff]
    %v1137 = vld [vmem:[#allocation6 + $0x38] sm:$0xff]
    %v1138 = vld [vmem:[#allocation6 + $0x40] sm:$0xff]
    %v1139 = vld [vmem:[#allocation6 + $0x48] sm:$0xff]
    %v1140 = vld [vmem:[#allocation6 + $0x50] sm:$0xff]
    %v1141 = vld [vmem:[#allocation6 + $0x58] sm:$0xff]
    %v1142 = vld [vmem:[#allocation6 + $0x60] sm:$0xff]
    %v1143 = vld [vmem:[#allocation6 + $0x68] sm:$0xff]
    %v1144 = vld [vmem:[#allocation6 + $0x70] sm:$0xff]
    %v1145 = vld [vmem:[#allocation6 + $0x78] sm:$0xff]
    %v1146 = vld [vmem:[#allocation6 + $0x80] sm:$0xff]
    %v1147 = vld [vmem:[#allocation6 + $0x88] sm:$0xff]
    %v1148 = vld [vmem:[#allocation6 + $0x90] sm:$0xff]
    %v1149 = vld [vmem:[#allocation6 + $0x98] sm:$0xff]
    %v1150 = vld [vmem:[#allocation6 + $0xa0] sm:$0xff]
    %v1151 = vld [vmem:[#allocation6 + $0xa8] sm:$0xff]
    %v1152 = vld [vmem:[#allocation6 + $0xb0] sm:$0xff]
    %v1153 = vld [vmem:[#allocation6 + $0xb8] sm:$0xff]
    %v1154 = vld [vmem:[#allocation6 + $0xc0] sm:$0xff]
    %v1155 = vld [vmem:[#allocation6 + $0xc8] sm:$0xff]
    %v1156 = vld [vmem:[#allocation6 + $0xd0] sm:$0xff]
    %v1157 = vld [vmem:[#allocation6 + $0xd8] sm:$0xff]
    %v1158 = vld [vmem:[#allocation6 + $0xe0] sm:$0xff]
    %v1159 = vld [vmem:[#allocation6 + $0xe8] sm:$0xff]
    %v1160 = vld [vmem:[#allocation6 + $0xf0] sm:$0xff]
    %v1161 = vld [vmem:[#allocation6 + $0xf8] sm:$0xff]
    %v1162 = vld [vmem:[%s6] sm:$0x3]
    %v1164 = vlaneseq
    %v1165 = vshrl.u32 %v1164, 7
    %v1166 = vsub.s32 0, %v1165
    %v1167 = vrot.slane %v1162, %v1166
    %v1168 = vlaneseq
    %v1169 = vshrl.u32 %v1168, 7
    %v1170 = vsub.s32 1, %v1169
    %v1171 = vrot.slane %v1162, %v1170
    %v1206 = vunpack.c.l.b16 %v1130
    %v1207 = vunpack.c.h.b16 %v1130
    %v1208 = vunpack.c.l.b16 %v1131
    %v1209 = vunpack.c.h.b16 %v1131
    %v1210 = vunpack.c.l.b16 %v1132
    %v1211 = vunpack.c.h.b16 %v1132
    %v1212 = vunpack.c.l.b16 %v1133
    %v1213 = vunpack.c.h.b16 %v1133
    %v1214 = vunpack.c.l.b16 %v1134
    %v1215 = vunpack.c.h.b16 %v1134
    %v1216 = vunpack.c.l.b16 %v1135
    %v1217 = vunpack.c.h.b16 %v1135
    %v1218 = vunpack.c.l.b16 %v1136
    %v1219 = vunpack.c.h.b16 %v1136
    %v1220 = vunpack.c.l.b16 %v1137
    %v1221 = vunpack.c.h.b16 %v1137
    %v1222 = vunpack.c.l.b16 %v1138
    %v1223 = vunpack.c.h.b16 %v1138
    %v1224 = vunpack.c.l.b16 %v1139
    %v1225 = vunpack.c.h.b16 %v1139
    %v1226 = vunpack.c.l.b16 %v1140
    %v1227 = vunpack.c.h.b16 %v1140
    %v1228 = vunpack.c.l.b16 %v1141
    %v1229 = vunpack.c.h.b16 %v1141
    %v1230 = vunpack.c.l.b16 %v1142
    %v1231 = vunpack.c.h.b16 %v1142
    %v1232 = vunpack.c.l.b16 %v1143
    %v1233 = vunpack.c.h.b16 %v1143
    %v1234 = vunpack.c.l.b16 %v1144
    %v1235 = vunpack.c.h.b16 %v1144
    %v1236 = vunpack.c.l.b16 %v1145
    %v1237 = vunpack.c.h.b16 %v1145
    %v1238 = vunpack.c.l.b16 %v1146
    %v1239 = vunpack.c.h.b16 %v1146
    %v1240 = vunpack.c.l.b16 %v1147
    %v1241 = vunpack.c.h.b16 %v1147
    %v1242 = vunpack.c.l.b16 %v1148
    %v1243 = vunpack.c.h.b16 %v1148
    %v1244 = vunpack.c.l.b16 %v1149
    %v1245 = vunpack.c.h.b16 %v1149
    %v1246 = vunpack.c.l.b16 %v1150
    %v1247 = vunpack.c.h.b16 %v1150
    %v1248 = vunpack.c.l.b16 %v1151
    %v1249 = vunpack.c.h.b16 %v1151
    %v1250 = vunpack.c.l.b16 %v1152
    %v1251 = vunpack.c.h.b16 %v1152
    %v1252 = vunpack.c.l.b16 %v1153
    %v1253 = vunpack.c.h.b16 %v1153
    %v1254 = vunpack.c.l.b16 %v1154
    %v1255 = vunpack.c.h.b16 %v1154
    %v1256 = vunpack.c.l.b16 %v1155
    %v1257 = vunpack.c.h.b16 %v1155
    %v1258 = vunpack.c.l.b16 %v1156
    %v1259 = vunpack.c.h.b16 %v1156
    %v1260 = vunpack.c.l.b16 %v1157
    %v1261 = vunpack.c.h.b16 %v1157
    %v1262 = vunpack.c.l.b16 %v1158
    %v1263 = vunpack.c.h.b16 %v1158
    %v1264 = vunpack.c.l.b16 %v1159
    %v1265 = vunpack.c.h.b16 %v1159
    %v1266 = vunpack.c.l.b16 %v1160
    %v1267 = vunpack.c.h.b16 %v1160
    %v1268 = vunpack.c.l.b16 %v1161
    %v1269 = vunpack.c.h.b16 %v1161
    %v1270 = vpack.c.b16 %v1208, %v1206
    %v1271 = vpack.c.b16 %v1209, %v1207
    %v1272 = vpack.c.b16 %v1212, %v1210
    %v1273 = vpack.c.b16 %v1213, %v1211
    %v1274 = vpack.c.b16 %v1216, %v1214
    %v1275 = vpack.c.b16 %v1217, %v1215
    %v1276 = vpack.c.b16 %v1220, %v1218
    %v1277 = vpack.c.b16 %v1221, %v1219
    %v1278 = vpack.c.b16 %v1224, %v1222
    %v1279 = vpack.c.b16 %v1225, %v1223
    %v1280 = vpack.c.b16 %v1228, %v1226
    %v1281 = vpack.c.b16 %v1229, %v1227
    %v1282 = vpack.c.b16 %v1232, %v1230
    %v1283 = vpack.c.b16 %v1233, %v1231
    %v1284 = vpack.c.b16 %v1236, %v1234
    %v1285 = vpack.c.b16 %v1237, %v1235
    %v1286 = vpack.c.b16 %v1240, %v1238
    %v1287 = vpack.c.b16 %v1241, %v1239
    %v1288 = vpack.c.b16 %v1244, %v1242
    %v1289 = vpack.c.b16 %v1245, %v1243
    %v1290 = vpack.c.b16 %v1248, %v1246
    %v1291 = vpack.c.b16 %v1249, %v1247
    %v1292 = vpack.c.b16 %v1252, %v1250
    %v1293 = vpack.c.b16 %v1253, %v1251
    %v1294 = vpack.c.b16 %v1256, %v1254
    %v1295 = vpack.c.b16 %v1257, %v1255
    %v1296 = vpack.c.b16 %v1260, %v1258
    %v1297 = vpack.c.b16 %v1261, %v1259
    %v1298 = vpack.c.b16 %v1264, %v1262
    %v1299 = vpack.c.b16 %v1265, %v1263
    %v1300 = vpack.c.b16 %v1268, %v1266
    %v1301 = vpack.c.b16 %v1269, %v1267
    %1334 = vmatprep.subr.bf16.mxu0 %v1271
    %1335 = vmatpush1.bf16.msra.mxu0 %v1270
    %1336 = vmatprep.subr.bf16.mxu0 %v1273
    %1337 = vmatpush1.bf16.msra.mxu0 %v1272
    %1338 = vmatprep.subr.bf16.mxu0 %v1275
    %1339 = vmatpush1.bf16.msra.mxu0 %v1274
    %1340 = vmatprep.subr.bf16.mxu0 %v1277
    %1341 = vmatpush1.bf16.msra.mxu0 %v1276
    %1342 = vmatprep.subr.bf16.mxu0 %v1279
    %1343 = vmatpush1.bf16.msra.mxu0 %v1278
    %1344 = vmatprep.subr.bf16.mxu0 %v1281
    %1345 = vmatpush1.bf16.msra.mxu0 %v1280
    %1346 = vmatprep.subr.bf16.mxu0 %v1283
    %1347 = vmatpush1.bf16.msra.mxu0 %v1282
    %1348 = vmatprep.subr.bf16.mxu0 %v1285
    %1349 = vmatpush1.bf16.msra.mxu0 %v1284
    %1350 = vmatprep.subr.bf16.mxu0 %v1287
    %1351 = vmatpush1.bf16.msra.mxu0 %v1286
    %1352 = vmatprep.subr.bf16.mxu0 %v1289
    %1353 = vmatpush1.bf16.msra.mxu0 %v1288
    %1354 = vmatprep.subr.bf16.mxu0 %v1291
    %1355 = vmatpush1.bf16.msra.mxu0 %v1290
    %1356 = vmatprep.subr.bf16.mxu0 %v1293
    %1357 = vmatpush1.bf16.msra.mxu0 %v1292
    %1358 = vmatprep.subr.bf16.mxu0 %v1295
    %1359 = vmatpush1.bf16.msra.mxu0 %v1294
    %1360 = vmatprep.subr.bf16.mxu0 %v1297
    %1361 = vmatpush1.bf16.msra.mxu0 %v1296
    %1362 = vmatprep.subr.bf16.mxu0 %v1299
    %1363 = vmatpush1.bf16.msra.mxu0 %v1298
    %1364 = vmatprep.subr.bf16.mxu0 %v1301
    %1365 = vmatpush1.bf16.msra.mxu0 %v1300
    %1366 = vmatprep.mubr.bf16.mxu0 %v1129
    %1367 = vmatmul.mubr.bf16.gmra.mrb[0].mxu0 %v1128
    %v1368 = vpop.f32.mrb[0].mxu0
    %v1369 = vadd.f32 %v1167, %v1368
    %v1370 = vpop.f32.mrb[0].mxu0
    %v1371 = vadd.f32 %v1171, %v1370
    %v1372 = vpop.f32.mrb[0].mxu0
    %v1373 = vadd.f32 %v1167, %v1372
    %v1374 = vpop.f32.mrb[0].mxu0
    %v1375 = vadd.f32 %v1171, %v1374
    %1376 = vdwg.mxu0
    %v1377 = vmax.f32 %v1369, 0.0
    %v1378 = vmax.f32 %v1371, 0.0
    %v1379 = vmax.f32 %v1373, 0.0
    %v1380 = vmax.f32 %v1375, 0.0
    %v1381 = vpack.c.bf16 %v1379, %v1377
    %v1382 = vpack.c.bf16 %v1380, %v1378
    %v1383 = vld [vmem:[%s7] sm:$0xf]
    %v1384 = vld [vmem:[%s7 + $0x4] sm:$0xf]
    %v1385 = vld [vmem:[%s7 + $0x8] sm:$0xf]
    %v1386 = vld [vmem:[%s7 + $0xc] sm:$0xf]
    %v1387 = vld [vmem:[%s7 + $0x10] sm:$0xf]
    %v1388 = vld [vmem:[%s7 + $0x14] sm:$0xf]
    %v1389 = vld [vmem:[%s7 + $0x18] sm:$0xf]
    %v1390 = vld [vmem:[%s7 + $0x1c] sm:$0xf]
    %v1391 = vld [vmem:[%s7 + $0x20] sm:$0xf]
    %v1392 = vld [vmem:[%s7 + $0x24] sm:$0xf]
    %v1393 = vld [vmem:[%s7 + $0x28] sm:$0xf]
    %v1394 = vld [vmem:[%s7 + $0x2c] sm:$0xf]
    %v1395 = vld [vmem:[%s7 + $0x30] sm:$0xf]
    %v1396 = vld [vmem:[%s7 + $0x34] sm:$0xf]
    %v1397 = vld [vmem:[%s7 + $0x38] sm:$0xf]
    %v1398 = vld [vmem:[%s7 + $0x3c] sm:$0xf]
    %v1399 = vld [vmem:[%s7 + $0x40] sm:$0xf]
    %v1400 = vld [vmem:[%s7 + $0x44] sm:$0xf]
    %v1401 = vld [vmem:[%s7 + $0x48] sm:$0xf]
    %v1402 = vld [vmem:[%s7 + $0x4c] sm:$0xf]
    %v1403 = vld [vmem:[%s7 + $0x50] sm:$0xf]
    %v1404 = vld [vmem:[%s7 + $0x54] sm:$0xf]
    %v1405 = vld [vmem:[%s7 + $0x58] sm:$0xf]
    %v1406 = vld [vmem:[%s7 + $0x5c] sm:$0xf]
    %v1407 = vld [vmem:[%s7 + $0x60] sm:$0xf]
    %v1408 = vld [vmem:[%s7 + $0x64] sm:$0xf]
    %v1409 = vld [vmem:[%s7 + $0x68] sm:$0xf]
    %v1410 = vld [vmem:[%s7 + $0x6c] sm:$0xf]
    %v1411 = vld [vmem:[%s7 + $0x70] sm:$0xf]
    %v1412 = vld [vmem:[%s7 + $0x74] sm:$0xf]
    %v1413 = vld [vmem:[%s7 + $0x78] sm:$0xf]
    %v1414 = vld [vmem:[%s7 + $0x7c] sm:$0xf]
    %v1415 = vld [vmem:[%s8] sm:$0x1]
    %v1417 = vlaneseq
    %v1418 = vshrl.u32 %v1417, 7
    %v1419 = vsub.s32 0, %v1418
    %v1420 = vrot.slane %v1415, %v1419
    %v1454 = vunpack.c.l.b16 %v1383
    %v1455 = vunpack.c.l.b16 %v1384
    %v1456 = vunpack.c.l.b16 %v1385
    %v1457 = vunpack.c.l.b16 %v1386
    %v1458 = vunpack.c.l.b16 %v1387
    %v1459 = vunpack.c.l.b16 %v1388
    %v1460 = vunpack.c.l.b16 %v1389
    %v1461 = vunpack.c.l.b16 %v1390
    %v1462 = vunpack.c.l.b16 %v1391
    %v1463 = vunpack.c.l.b16 %v1392
    %v1464 = vunpack.c.l.b16 %v1393
    %v1465 = vunpack.c.l.b16 %v1394
    %v1466 = vunpack.c.l.b16 %v1395
    %v1467 = vunpack.c.l.b16 %v1396
    %v1468 = vunpack.c.l.b16 %v1397
    %v1469 = vunpack.c.l.b16 %v1398
    %v1470 = vunpack.c.l.b16 %v1399
    %v1471 = vunpack.c.l.b16 %v1400
    %v1472 = vunpack.c.l.b16 %v1401
    %v1473 = vunpack.c.l.b16 %v1402
    %v1474 = vunpack.c.l.b16 %v1403
    %v1475 = vunpack.c.l.b16 %v1404
    %v1476 = vunpack.c.l.b16 %v1405
    %v1477 = vunpack.c.l.b16 %v1406
    %v1478 = vunpack.c.l.b16 %v1407
    %v1479 = vunpack.c.l.b16 %v1408
    %v1480 = vunpack.c.l.b16 %v1409
    %v1481 = vunpack.c.l.b16 %v1410
    %v1482 = vunpack.c.l.b16 %v1411
    %v1483 = vunpack.c.l.b16 %v1412
    %v1484 = vunpack.c.l.b16 %v1413
    %v1485 = vunpack.c.l.b16 %v1414
    %v1486 = vpack.c.b16 %v1455, %v1454
    %v1487 = vpack.c.b16 %v1457, %v1456
    %v1488 = vpack.c.b16 %v1459, %v1458
    %v1489 = vpack.c.b16 %v1461, %v1460
    %v1490 = vpack.c.b16 %v1463, %v1462
    %v1491 = vpack.c.b16 %v1465, %v1464
    %v1492 = vpack.c.b16 %v1467, %v1466
    %v1493 = vpack.c.b16 %v1469, %v1468
    %v1494 = vpack.c.b16 %v1471, %v1470
    %v1495 = vpack.c.b16 %v1473, %v1472
    %v1496 = vpack.c.b16 %v1475, %v1474
    %v1497 = vpack.c.b16 %v1477, %v1476
    %v1498 = vpack.c.b16 %v1479, %v1478
    %v1499 = vpack.c.b16 %v1481, %v1480
    %v1500 = vpack.c.b16 %v1483, %v1482
    %v1501 = vpack.c.b16 %v1485, %v1484
    %1518 = vmatprep.subr.bf16.mxu0 0
    %1519 = vmatpush1.bf16.msra.mxu0 %v1486
    %1520 = vmatprep.subr.bf16.mxu0 0
    %1521 = vmatpush1.bf16.msra.mxu0 %v1487
    %1522 = vmatprep.subr.bf16.mxu0 0
    %1523 = vmatpush1.bf16.msra.mxu0 %v1488
    %1524 = vmatprep.subr.bf16.mxu0 0
    %1525 = vmatpush1.bf16.msra.mxu0 %v1489
    %1526 = vmatprep.subr.bf16.mxu0 0
    %1527 = vmatpush1.bf16.msra.mxu0 %v1490
    %1528 = vmatprep.subr.bf16.mxu0 0
    %1529 = vmatpush1.bf16.msra.mxu0 %v1491
    %1530 = vmatprep.subr.bf16.mxu0 0
    %1531 = vmatpush1.bf16.msra.mxu0 %v1492
    %1532 = vmatprep.subr.bf16.mxu0 0
    %1533 = vmatpush1.bf16.msra.mxu0 %v1493
    %1534 = vmatprep.subr.bf16.mxu0 0
    %1535 = vmatpush1.bf16.msra.mxu0 %v1494
    %1536 = vmatprep.subr.bf16.mxu0 0
    %1537 = vmatpush1.bf16.msra.mxu0 %v1495
    %1538 = vmatprep.subr.bf16.mxu0 0
    %1539 = vmatpush1.bf16.msra.mxu0 %v1496
    %1540 = vmatprep.subr.bf16.mxu0 0
    %1541 = vmatpush1.bf16.msra.mxu0 %v1497
    %1542 = vmatprep.subr.bf16.mxu0 0
    %1543 = vmatpush1.bf16.msra.mxu0 %v1498
    %1544 = vmatprep.subr.bf16.mxu0 0
    %1545 = vmatpush1.bf16.msra.mxu0 %v1499
    %1546 = vmatprep.subr.bf16.mxu0 0
    %1547 = vmatpush1.bf16.msra.mxu0 %v1500
    %1548 = vmatprep.subr.bf16.mxu0 0
    %1549 = vmatpush1.bf16.msra.mxu0 %v1501
    %1550 = vmatprep.mubr.bf16.mxu0 %v1382
    %1551 = vmatmul.mubr.bf16.gmra.mrb[0].mxu0 %v1381
    %v1552 = vpop.f32.mrb[0].mxu0
    %v1553 = vadd.f32 %v1420, %v1552
    %v1554 = vpop.f32.mrb[0].mxu0
    %v1555 = vpop.f32.mrb[0].mxu0
    %v1556 = vadd.f32 %v1420, %v1555
    %v1557 = vpop.f32.mrb[0].mxu0
    %1558 = vdwg.mxu0
    %1559 = vst [vmem:[%s9] sm:$0xff] %v1553
    %1560 = vst [vmem:[%s9 + $0x8] sm:$0xff] %v1556
    // Predicated region
    $region50: #{network_forward.1} parent=1 // pred_check
      _
    $region51: #{network_forward.1} parent=1 // pred_check_branch
      %1562 = sbr.rel (0) target = $region53
    $region52: #{network_forward.1} parent=1 // pred_region
      _
    $region53: #{network_forward.1} parent=1 // pred_fallthru
      _
    // Predicated region
    $region54: #{network_forward.1} parent=1 // pred_check
      _
    $region55: #{network_forward.1} parent=1 // pred_check_branch
      %1564 = sbr.rel (0) target = $region57
    $region56: #{network_forward.1} parent=1 // pred_region
      _
    $region57: #{network_forward.1} parent=1 // pred_fallthru
      _
    %1565 = vsyncpa [#allocation3], 1
    %1566 = vsyncpa [#allocation5], 1

</llo_original>
